<compile_context>
chip_gen: v7x
topology: tpu7x:2x2x1
jax: 0.10.0
libtpu: 0.0.40
codegen_flags: <defaults>
</compile_context>

<pallas_src>
import functools

import jax
import jax.numpy as jnp
from jax.experimental import pallas as pl
from jax.experimental.pallas import tpu as pltpu

HIDDEN = 100
H_PAD = 128  # lane-aligned hidden / output width


def _round_up(n, m):
    return (n + m - 1) // m * m


# ----------------------------------------------------------------------------
# Kernel
# ----------------------------------------------------------------------------
def _qnetwork_kernel(x_ref, w_ref, b_ref, o_ref, *, in_pad, h_pad):
    # x_ref: (TB, in_pad) bf16 ; w_ref: (in_pad + 2*h_pad, h_pad) bf16 (packed)
    # b_ref: (3, h_pad) f32    ; o_ref: (TB, h_pad) f32
    x = x_ref[...]
    # Static, tile-aligned slices of the packed weight slab (offsets are
    # multiples of 128 -> no relayout copies).
    w1 = w_ref[0:in_pad, :]
    w2 = w_ref[in_pad:in_pad + h_pad, :]
    w3 = w_ref[in_pad + h_pad:in_pad + 2 * h_pad, :]
    b = b_ref[...]
    b1 = b[0:1, :]
    b2 = b[1:2, :]
    b3 = b[2:3, :]

    # Layer 1: bf16 matmul on MXU, f32 accumulate; bias + ReLU in f32 on VPU.
    h1 = jnp.dot(x, w1, preferred_element_type=jnp.float32)
    h1 = jnp.maximum(h1 + b1, 0.0)
    # Layer 2
    h2 = jnp.dot(h1.astype(jnp.bfloat16), w2, preferred_element_type=jnp.float32)
    h2 = jnp.maximum(h2 + b2, 0.0)
    # Layer 3 (lane-dense 128-wide store; wrapper slices back to output_size)
    out = jnp.dot(h2.astype(jnp.bfloat16), w3, preferred_element_type=jnp.float32)
    o_ref[...] = (out + b3).astype(o_ref.dtype)


# ----------------------------------------------------------------------------
# Wrapper
# ----------------------------------------------------------------------------
def qnetwork_forward(x, w_packed, b_packed, *, output_size, in_pad, h_pad=H_PAD):
    """x: (B, input_size) f32. w_packed: (in_pad+2*h_pad, h_pad) bf16.
    b_packed: (3, h_pad) f32. Returns (B, output_size) f32."""
    B, in_features = x.shape

    # Batch tile: large enough to fill the MXU / pipeline, 16-row aligned for
    # bf16 sublane packing. VMEM budget is tiny here (weights ~96 KiB), so even
    # on v7x's 64 MiB the largest sensible TB is fine.
    TB = min(512, _round_up(B, 16))
    B_pad = _round_up(B, TB)

    # Pad batch + features, cast activations to bf16 for the MXU / half DMA.
    xp = jnp.pad(x, ((0, B_pad - B), (0, in_pad - in_features))).astype(jnp.bfloat16)

    n_w_rows = w_packed.shape[0]
    grid = (B_pad // TB,)

    flops = 2 * B_pad * (in_pad * h_pad + h_pad * h_pad + h_pad * h_pad)
    bytes_accessed = (xp.size * 2 + w_packed.size * 2 + b_packed.size * 4
                      + B_pad * h_pad * 4)

    out = pl.pallas_call(
        functools.partial(_qnetwork_kernel, in_pad=in_pad, h_pad=h_pad),
        out_shape=jax.ShapeDtypeStruct((B_pad, h_pad), jnp.float32),
        grid_spec=pltpu.PrefetchScalarGridSpec(
            num_scalar_prefetch=0,
            grid=grid,
            in_specs=[
                # batch-tiled activations
                pl.BlockSpec((TB, in_pad), lambda i: (i, 0)),
                # packed weights / biases: constant index_map -> VMEM-resident,
                # not re-DMA'd per grid step
                pl.BlockSpec((n_w_rows, h_pad), lambda i: (0, 0)),
                pl.BlockSpec((3, h_pad), lambda i: (0, 0)),
            ],
            out_specs=pl.BlockSpec((TB, h_pad), lambda i: (i, 0)),
        ),
        compiler_params=pltpu.CompilerParams(
            dimension_semantics=("parallel",)),  # shards batch across TCs on v7x
        cost_estimate=pl.CostEstimate(
            flops=flops, transcendentals=0, bytes_accessed=bytes_accessed),
    )(xp, w_packed, b_packed)

    return out[:B, :output_size]


# ----------------------------------------------------------------------------
# Params (PyTorch-style init), padding + packing
# ----------------------------------------------------------------------------
def init_params(key, input_size, output_size, hidden=HIDDEN):
    """PyTorch Linear-style uniform init. Weights stored transposed:
    (in_features, out_features) so the kernel computes y = x @ W + b."""
    ks = jax.random.split(key, 6)

    def linear(kw, kb, fan_in, fan_out):
        bound = 1.0 / jnp.sqrt(jnp.float32(fan_in))
        w = jax.random.uniform(kw, (fan_in, fan_out), jnp.float32, -bound, bound)
        b = jax.random.uniform(kb, (1, fan_out), jnp.float32, -bound, bound)
        return w, b

    w1, b1 = linear(ks[0], ks[1], input_size, hidden)
    w2, b2 = linear(ks[2], ks[3], hidden, hidden)
    w3, b3 = linear(ks[4], ks[5], hidden, output_size)
    return {"w1": w1, "b1": b1, "w2": w2, "b2": b2, "w3": w3, "b3": b3}


def pack_params(p, input_size, h_pad=H_PAD):
    """Zero-pad all layers to 128-wide, pack weights into one bf16 slab
    (rows: [W1 | W2 | W3]) and biases into one (3, 128) f32 slab."""
    in_pad = _round_up(max(input_size, 1), 128)

    def pad2(a, rows, cols):
        return jnp.pad(a, ((0, rows - a.shape[0]), (0, cols - a.shape[1])))

    w1 = pad2(p["w1"], in_pad, h_pad)
    w2 = pad2(p["w2"], h_pad, h_pad)
    w3 = pad2(p["w3"], h_pad, h_pad)
    w_packed = jnp.concatenate([w1, w2, w3], axis=0).astype(jnp.bfloat16)

    b1 = pad2(p["b1"], 1, h_pad)
    b2 = pad2(p["b2"], 1, h_pad)
    b3 = pad2(p["b3"], 1, h_pad)
    b_packed = jnp.concatenate([b1, b2, b3], axis=0).astype(jnp.float32)
    return w_packed, b_packed, in_pad


# ----------------------------------------------------------------------------
# References
# ----------------------------------------------------------------------------
def qnetwork_ref_f32(x, p):
    h = jnp.maximum(x @ p["w1"] + p["b1"], 0.0)
    h = jnp.maximum(h @ p["w2"] + p["b2"], 0.0)
    return h @ p["w3"] + p["b3"]


def qnetwork_ref_bf16(x, w_packed, b_packed, output_size, in_pad, h_pad=H_PAD):
    """Mirrors the kernel's bf16-operand / f32-accumulate arithmetic."""
    xp = jnp.pad(x, ((0, 0), (0, in_pad - x.shape[1]))).astype(jnp.bfloat16)
    w1 = w_packed[0:in_pad]
    w2 = w_packed[in_pad:in_pad + h_pad]
    w3 = w_packed[in_pad + h_pad:in_pad + 2 * h_pad]
    h = jnp.maximum(
        jnp.dot(xp, w1, preferred_element_type=jnp.float32) + b_packed[0:1], 0.0)
    h = jnp.maximum(
        jnp.dot(h.astype(jnp.bfloat16), w2, preferred_element_type=jnp.float32)
        + b_packed[1:2], 0.0)
    o = (jnp.dot(h.astype(jnp.bfloat16), w3, preferred_element_type=jnp.float32)
         + b_packed[2:3])
    return o[:, :output_size]


# ----------------------------------------------------------------------------
if __name__ == "__main__":
    key = jax.random.PRNGKey(0)
    k_params, k_x = jax.random.split(key)

    batch, input_size, output_size = 8, 32, 8
    params = init_params(k_params, input_size, output_size)
    w_packed, b_packed, in_pad = pack_params(params, input_size)
    x = jax.random.normal(k_x, (batch, input_size), jnp.float32)

    out = qnetwork_forward(x, w_packed, b_packed,
                           output_size=output_size, in_pad=in_pad)
    out = jax.block_until_ready(out)

    assert out.shape == (batch, output_size), out.shape

    # Tight check vs a reference using the same bf16 operands / f32 accumulation.
    ref_bf16 = qnetwork_ref_bf16(x, w_packed, b_packed, output_size, in_pad)
    assert jnp.allclose(out, ref_bf16, atol=1e-2, rtol=1e-2), "mismatch vs bf16 reference"

    # Loose sanity check vs the original f32 math (bf16 rounding of operands).
    ref_f32 = qnetwork_ref_f32(x, params)
    assert jnp.allclose(out, ref_f32, atol=5e-2, rtol=5e-2), "mismatch vs f32 reference"

    print("KERNEL_OK")
</pallas_src>

<mosaic_0001>
module attributes {stable_mosaic.version = 11 : i64} {
  func.func @_qnetwork_kernel(%arg0: i32, %arg1: memref<16x128xbf16, #tpu.memory_space<vmem>>, %arg2: memref<384x128xbf16, #tpu.memory_space<vmem>>, %arg3: memref<3x128xf32, #tpu.memory_space<vmem>>, %arg4: memref<16x128xf32, #tpu.memory_space<vmem>>) attributes {dimension_semantics = [#tpu.dimension_semantics<parallel>], iteration_bounds = array<i64: 1>, scalar_prefetch = 0 : i64, scratch_operands = 0 : i64, tpu.core_type = #tpu.core_type<tc>, window_params = [{transform_indices = @transform_0, window_bounds = array<i64: 16, 128>}, {pipeline_mode = #tpu.pipeline_mode<synchronous>, transform_indices = @transform_1, window_bounds = array<i64: 384, 128>}, {pipeline_mode = #tpu.pipeline_mode<synchronous>, transform_indices = @transform_2, window_bounds = array<i64: 3, 128>}, {transform_indices = @transform_3, window_bounds = array<i64: 16, 128>}]} {
    %c0 = arith.constant 0 : index
    %c0_0 = arith.constant 0 : index
    %0 = vector.load %arg1[%c0, %c0_0] : memref<16x128xbf16, #tpu.memory_space<vmem>>, vector<16x128xbf16>
    %c0_1 = arith.constant 0 : index
    %c0_2 = arith.constant 0 : index
    %1 = vector.load %arg2[%c0_1, %c0_2] : memref<384x128xbf16, #tpu.memory_space<vmem>>, vector<128x128xbf16>
    %c128 = arith.constant 128 : index
    %c0_3 = arith.constant 0 : index
    %2 = vector.load %arg2[%c128, %c0_3] : memref<384x128xbf16, #tpu.memory_space<vmem>>, vector<128x128xbf16>
    %c256 = arith.constant 256 : index
    %c0_4 = arith.constant 0 : index
    %3 = vector.load %arg2[%c256, %c0_4] : memref<384x128xbf16, #tpu.memory_space<vmem>>, vector<128x128xbf16>
    %c0_5 = arith.constant 0 : index
    %c0_6 = arith.constant 0 : index
    %4 = vector.load %arg3[%c0_5, %c0_6] : memref<3x128xf32, #tpu.memory_space<vmem>>, vector<3x128xf32>
    %5 = vector.extract_strided_slice %4 {offsets = [0, 0], sizes = [1, 128], strides = [1, 1]} : vector<3x128xf32> to vector<1x128xf32>
    %6 = vector.extract_strided_slice %4 {offsets = [1, 0], sizes = [1, 128], strides = [1, 1]} : vector<3x128xf32> to vector<1x128xf32>
    %7 = vector.extract_strided_slice %4 {offsets = [2, 0], sizes = [1, 128], strides = [1, 1]} : vector<3x128xf32> to vector<1x128xf32>
    %cst = arith.constant dense<0.000000e+00> : vector<16x128xf32>
    %8 = tpu.matmul %0, %1, %cst {dimension_numbers = #tpu.dot_dimension_numbers<[1], [0], [0], [1], [0, 0, 1, 1], [], []>} : vector<16x128xbf16>, vector<128x128xbf16>, vector<16x128xf32> -> vector<16x128xf32>
    %9 = vector.broadcast %5 : vector<1x128xf32> to vector<16x128xf32>
    %10 = arith.addf %8, %9 : vector<16x128xf32>
    %cst_7 = arith.constant 0.000000e+00 : f32
    %11 = vector.broadcast %cst_7 : f32 to vector<16x128xf32>
    %12 = arith.maximumf %10, %11 : vector<16x128xf32>
    %13 = arith.truncf %12 : vector<16x128xf32> to vector<16x128xbf16>
    %cst_8 = arith.constant dense<0.000000e+00> : vector<16x128xf32>
    %14 = tpu.matmul %13, %2, %cst_8 {dimension_numbers = #tpu.dot_dimension_numbers<[1], [0], [0], [1], [0, 0, 1, 1], [], []>} : vector<16x128xbf16>, vector<128x128xbf16>, vector<16x128xf32> -> vector<16x128xf32>
    %15 = vector.broadcast %6 : vector<1x128xf32> to vector<16x128xf32>
    %16 = arith.addf %14, %15 : vector<16x128xf32>
    %cst_9 = arith.constant 0.000000e+00 : f32
    %17 = vector.broadcast %cst_9 : f32 to vector<16x128xf32>
    %18 = arith.maximumf %16, %17 : vector<16x128xf32>
    %19 = arith.truncf %18 : vector<16x128xf32> to vector<16x128xbf16>
    %cst_10 = arith.constant dense<0.000000e+00> : vector<16x128xf32>
    %20 = tpu.matmul %19, %3, %cst_10 {dimension_numbers = #tpu.dot_dimension_numbers<[1], [0], [0], [1], [0, 0, 1, 1], [], []>} : vector<16x128xbf16>, vector<128x128xbf16>, vector<16x128xf32> -> vector<16x128xf32>
    %21 = vector.broadcast %7 : vector<1x128xf32> to vector<16x128xf32>
    %22 = arith.addf %20, %21 : vector<16x128xf32>
    %c0_11 = arith.constant 0 : index
    %c0_12 = arith.constant 0 : index
    %23 = vector.load %arg4[%c0_11, %c0_12] : memref<16x128xf32, #tpu.memory_space<vmem>>, vector<16x128xf32>
    tpu.vector_store %arg4[%c0_11, %c0_12], %22 {strides = array<i32>} : memref<16x128xf32, #tpu.memory_space<vmem>>, vector<16x128xf32>,
    return
  }
  func.func @transform_0(%arg0: i32) -> (i32, i32) {
    %c0_i32 = arith.constant 0 : i32
    %c0_i32_0 = arith.constant 0 : i32
    return %arg0, %c0_i32 : i32, i32
  }
  func.func @transform_1(%arg0: i32) -> (i32, i32) {
    %c0_i32 = arith.constant 0 : i32
    %c0_i32_0 = arith.constant 0 : i32
    %c0_i32_1 = arith.constant 0 : i32
    return %c0_i32, %c0_i32_0 : i32, i32
  }
  func.func @transform_2(%arg0: i32) -> (i32, i32) {
    %c0_i32 = arith.constant 0 : i32
    %c0_i32_0 = arith.constant 0 : i32
    %c0_i32_1 = arith.constant 0 : i32
    return %c0_i32, %c0_i32_0 : i32, i32
  }
  func.func @transform_3(%arg0: i32) -> (i32, i32) {
    %c0_i32 = arith.constant 0 : i32
    %c0_i32_0 = arith.constant 0 : i32
    return %arg0, %c0_i32 : i32, i32
  }
}

</mosaic_0001>

<llo_original>
// kernel: tpu_custom_call.1
$region0: #{tpu_custom_call.1}
  #allocation0 [shape = 'u32[]', space=smem, size = 0x4, offset = 0x4, fixed_abs, tag = 'smem constant byte address 0x4 - core index']
  #allocation1 [shape = 'u32[144,128]{1,0:T(1,128)}', space=vmem, size = 0x12000, scoped, tag = 'internal scratch']
  %s0 = inlined_call_operand.hbm [shape: bf16[16,128], index: 0, kind: input, shape index: {}]
  %s1 = inlined_call_operand.hbm [shape: bf16[384,128], index: 1, kind: input, shape index: {}]
  %s2 = inlined_call_operand.vmem [shape: f32[3,128], index: 2, kind: input, shape index: {}]
  %s3 = inlined_call_operand.hbm [shape: f32[16,128], index: 3, kind: output, shape index: {}]
  %s4 = sld [smem:[#allocation0]]
  $region30: #{tpu_custom_call.1} parent=0
    _
  %s6 = ssub.s32 1, %s4
  %s7 = scalar_select 0, %s6, %s4
  $region1: #{tpu_custom_call.1} parent=0
    #allocation2 [shape = 'u8[4096]{0}', space=vmem, size = 0x1000, scoped, tag = 'input window, operand 0, single buffered']
    #allocation3 [shape = 's32[1]{0}', space=sflag, size = 0x4, scoped, tag = 'scoped memory for tpu_custom_call.1']
    #allocation4 [shape = 's32[1]{0}', space=sflag, size = 0x4, scoped, tag = 'scoped memory for tpu_custom_call.1']
    #allocation5 [shape = 'u8[98304]{0}', space=vmem, size = 0x18000, scoped, tag = 'input window, operand 1, single buffered']
    #allocation6 [shape = 's32[1]{0}', space=sflag, size = 0x4, scoped, tag = 'scoped memory for tpu_custom_call.1']
    #allocation7 [shape = 'u8[8192]{0}', space=vmem, size = 0x2000, scoped, tag = 'output window, operand 0, single buffered']
    %8 = vsyncpa [#allocation3], 0
    %9 = vsyncpa [#allocation6], 0
    %10 = vsyncpa [#allocation4], 0
    // Predicated region
    $region2: #{tpu_custom_call.1} parent=1 // pred_check
      _
    $region3: #{tpu_custom_call.1} parent=1 // pred_check_branch
      %12 = sbr.rel (0) target = $region5
    $region4: #{tpu_custom_call.1} parent=1 // pred_region
      %s14 = ssub.s32 128, 128
      %15 = vsyncadd [#allocation3], %s14
      %s16 = sshll.u32 [#allocation2], 4
      %s17 = int_to_ptr.vmem [resolvable:$true] %s16
      %22 = dma.hbm_to_vmem [thread:$0]  %s0, 128, %s17, [#allocation3], 64, 64, 4
    $region5: #{tpu_custom_call.1} parent=1 // pred_fallthru
      _
    // Predicated region
    $region6: #{tpu_custom_call.1} parent=1 // pred_check
      _
    $region7: #{tpu_custom_call.1} parent=1 // pred_check_branch
      %24 = sbr.rel (0) target = $region9
    $region8: #{tpu_custom_call.1} parent=1 // pred_region
      %s26 = ssub.s32 3072, 3072
      %27 = vsyncadd [#allocation6], %s26
      %s28 = sshll.u32 [#allocation5], 4
      %s29 = int_to_ptr.vmem [resolvable:$true] %s28
      %34 = dma.hbm_to_vmem [thread:$0]  %s1, 3072, %s29, [#allocation6], 64, 64, 4
    $region9: #{tpu_custom_call.1} parent=1 // pred_fallthru
      _
    // Predicated region
    $region10: #{tpu_custom_call.1} parent=1 // pred_check
      _
    $region11: #{tpu_custom_call.1} parent=1 // pred_check_branch
      %36 = sbr.rel (0) target = $region13
    $region12: #{tpu_custom_call.1} parent=1 // pred_region
      _
    $region13: #{tpu_custom_call.1} parent=1 // pred_fallthru
      _
    // Predicated region
    $region14: #{tpu_custom_call.1} parent=1 // pred_check
      _
    $region15: #{tpu_custom_call.1} parent=1 // pred_check_branch
      %38 = sbr.rel (0) target = $region17
    $region16: #{tpu_custom_call.1} parent=1 // pred_region
      %39 = dma.done [#allocation3], 128
    $region17: #{tpu_custom_call.1} parent=1 // pred_fallthru
      _
    // Predicated region
    $region18: #{tpu_custom_call.1} parent=1 // pred_check
      _
    $region19: #{tpu_custom_call.1} parent=1 // pred_check_branch
      %41 = sbr.rel (0) target = $region21
    $region20: #{tpu_custom_call.1} parent=1 // pred_region
      %42 = dma.done [#allocation6], 3072
    $region21: #{tpu_custom_call.1} parent=1 // pred_fallthru
      _
    %v44 = vld [vmem:[#allocation2] sm:$0xf]
    %v45 = vld [vmem:[#allocation2 + $0x4] sm:$0xf]
    %v46 = vld [vmem:[#allocation5] sm:$0xf]
    %v47 = vld [vmem:[#allocation5 + $0x4] sm:$0xf]
    %v48 = vld [vmem:[#allocation5 + $0x8] sm:$0xf]
    %v49 = vld [vmem:[#allocation5 + $0xc] sm:$0xf]
    %v50 = vld [vmem:[#allocation5 + $0x10] sm:$0xf]
    %v51 = vld [vmem:[#allocation5 + $0x14] sm:$0xf]
    %v52 = vld [vmem:[#allocation5 + $0x18] sm:$0xf]
    %v53 = vld [vmem:[#allocation5 + $0x1c] sm:$0xf]
    %v54 = vld [vmem:[#allocation5 + $0x20] sm:$0xf]
    %v55 = vld [vmem:[#allocation5 + $0x24] sm:$0xf]
    %v56 = vld [vmem:[#allocation5 + $0x28] sm:$0xf]
    %v57 = vld [vmem:[#allocation5 + $0x2c] sm:$0xf]
    %v58 = vld [vmem:[#allocation5 + $0x30] sm:$0xf]
    %v59 = vld [vmem:[#allocation5 + $0x34] sm:$0xf]
    %v60 = vld [vmem:[#allocation5 + $0x38] sm:$0xf]
    %v61 = vld [vmem:[#allocation5 + $0x3c] sm:$0xf]
    %v62 = vld [vmem:[#allocation5 + $0x40] sm:$0xf]
    %v63 = vld [vmem:[#allocation5 + $0x44] sm:$0xf]
    %v64 = vld [vmem:[#allocation5 + $0x48] sm:$0xf]
    %v65 = vld [vmem:[#allocation5 + $0x4c] sm:$0xf]
    %v66 = vld [vmem:[#allocation5 + $0x50] sm:$0xf]
    %v67 = vld [vmem:[#allocation5 + $0x54] sm:$0xf]
    %v68 = vld [vmem:[#allocation5 + $0x58] sm:$0xf]
    %v69 = vld [vmem:[#allocation5 + $0x5c] sm:$0xf]
    %v70 = vld [vmem:[#allocation5 + $0x60] sm:$0xf]
    %v71 = vld [vmem:[#allocation5 + $0x64] sm:$0xf]
    %v72 = vld [vmem:[#allocation5 + $0x68] sm:$0xf]
    %v73 = vld [vmem:[#allocation5 + $0x6c] sm:$0xf]
    %v74 = vld [vmem:[#allocation5 + $0x70] sm:$0xf]
    %v75 = vld [vmem:[#allocation5 + $0x74] sm:$0xf]
    %v76 = vld [vmem:[#allocation5 + $0x78] sm:$0xf]
    %v77 = vld [vmem:[#allocation5 + $0x7c] sm:$0xf]
    %v78 = vld [vmem:[#allocation5 + $0x80] sm:$0xf]
    %v79 = vld [vmem:[#allocation5 + $0x84] sm:$0xf]
    %v80 = vld [vmem:[#allocation5 + $0x88] sm:$0xf]
    %v81 = vld [vmem:[#allocation5 + $0x8c] sm:$0xf]
    %v82 = vld [vmem:[#allocation5 + $0x90] sm:$0xf]
    %v83 = vld [vmem:[#allocation5 + $0x94] sm:$0xf]
    %v84 = vld [vmem:[#allocation5 + $0x98] sm:$0xf]
    %v85 = vld [vmem:[#allocation5 + $0x9c] sm:$0xf]
    %v86 = vld [vmem:[#allocation5 + $0xa0] sm:$0xf]
    %v87 = vld [vmem:[#allocation5 + $0xa4] sm:$0xf]
    %v88 = vld [vmem:[#allocation5 + $0xa8] sm:$0xf]
    %v89 = vld [vmem:[#allocation5 + $0xac] sm:$0xf]
    %v90 = vld [vmem:[#allocation5 + $0xb0] sm:$0xf]
    %v91 = vld [vmem:[#allocation5 + $0xb4] sm:$0xf]
    %v92 = vld [vmem:[#allocation5 + $0xb8] sm:$0xf]
    %v93 = vld [vmem:[#allocation5 + $0xbc] sm:$0xf]
    %v94 = vld [vmem:[%s2] sm:$0x7]
    %v95 = vlaneseq
    %v96 = vshrl.u32 %v95, 7
    %v97 = vsub.s32 0, %v96
    %v98 = vrot.slane %v94, %v97
    %v101 = vunpack.c.l.b16 %v44
    %v102 = vunpack.c.l.b16 %v45
    %v103 = vpack.c.b16 %v102, %v101
    %v121 = vunpack.c.l.b16 %v46
    %v122 = vunpack.c.l.b16 %v47
    %v123 = vunpack.c.l.b16 %v48
    %v124 = vunpack.c.l.b16 %v49
    %v125 = vunpack.c.l.b16 %v50
    %v126 = vunpack.c.l.b16 %v51
    %v127 = vunpack.c.l.b16 %v52
    %v128 = vunpack.c.l.b16 %v53
    %v129 = vunpack.c.l.b16 %v54
    %v130 = vunpack.c.l.b16 %v55
    %v131 = vunpack.c.l.b16 %v56
    %v132 = vunpack.c.l.b16 %v57
    %v133 = vunpack.c.l.b16 %v58
    %v134 = vunpack.c.l.b16 %v59
    %v135 = vunpack.c.l.b16 %v60
    %v136 = vunpack.c.l.b16 %v61
    %v137 = vpack.c.b16 %v122, %v121
    %v138 = vpack.c.b16 %v124, %v123
    %v139 = vpack.c.b16 %v126, %v125
    %v140 = vpack.c.b16 %v128, %v127
    %v141 = vpack.c.b16 %v130, %v129
    %v142 = vpack.c.b16 %v132, %v131
    %v143 = vpack.c.b16 %v134, %v133
    %v144 = vpack.c.b16 %v136, %v135
    %153 = vmatprep.subr.bf16.mxu0 0
    %154 = vmatpush1.bf16.msra.mxu0 %v137
    %155 = vmatprep.subr.bf16.mxu0 0
    %156 = vmatpush1.bf16.msra.mxu0 %v138
    %157 = vmatprep.subr.bf16.mxu0 0
    %158 = vmatpush1.bf16.msra.mxu0 %v139
    %159 = vmatprep.subr.bf16.mxu0 0
    %160 = vmatpush1.bf16.msra.mxu0 %v140
    %161 = vmatprep.subr.bf16.mxu0 0
    %162 = vmatpush1.bf16.msra.mxu0 %v141
    %163 = vmatprep.subr.bf16.mxu0 0
    %164 = vmatpush1.bf16.msra.mxu0 %v142
    %165 = vmatprep.subr.bf16.mxu0 0
    %166 = vmatpush1.bf16.msra.mxu0 %v143
    %167 = vmatprep.subr.bf16.mxu0 0
    %168 = vmatpush1.bf16.msra.mxu0 %v144
    %169 = vmatprep.subr.bf16.mxu0 0
    %170 = vmatpush1.bf16.msra.mxu0 0
    %171 = vmatprep.subr.bf16.mxu0 0
    %172 = vmatpush1.bf16.msra.mxu0 0
    %173 = vmatprep.subr.bf16.mxu0 0
    %174 = vmatpush1.bf16.msra.mxu0 0
    %175 = vmatprep.subr.bf16.mxu0 0
    %176 = vmatpush1.bf16.msra.mxu0 0
    %177 = vmatprep.subr.bf16.mxu0 0
    %178 = vmatpush1.bf16.msra.mxu0 0
    %179 = vmatprep.subr.bf16.mxu0 0
    %180 = vmatpush1.bf16.msra.mxu0 0
    %181 = vmatprep.subr.bf16.mxu0 0
    %182 = vmatpush1.bf16.msra.mxu0 0
    %183 = vmatprep.subr.bf16.mxu0 0
    %184 = vmatpush1.bf16.msra.mxu0 0
    %185 = vmatprep.mubr.bf16.mxu0 0
    %186 = vmatmul.mubr.bf16.gmra.mrb[0].mxu0 %v103
    %v187 = vpop.f32.mrb[0].mxu0
    %v188 = vadd.f32 %v98, %v187
    %v189 = vpop.f32.mrb[0].mxu0
    %v190 = vpop.f32.mrb[0].mxu0
    %v191 = vadd.f32 %v98, %v190
    %v192 = vpop.f32.mrb[0].mxu0
    %193 = vdwg.mxu0
    %v194 = vmax.f32 %v188, 0.0
    %v195 = vmax.f32 %v191, 0.0
    %v196 = vpack.c.bf16 %v195, %v194
    %v197 = vlaneseq
    %v198 = vshrl.u32 %v197, 7
    %v199 = vsub.s32 1, %v198
    %v200 = vrot.slane %v94, %v199
    %v217 = vunpack.c.l.b16 %v62
    %v218 = vunpack.c.l.b16 %v63
    %v219 = vunpack.c.l.b16 %v64
    %v220 = vunpack.c.l.b16 %v65
    %v221 = vunpack.c.l.b16 %v66
    %v222 = vunpack.c.l.b16 %v67
    %v223 = vunpack.c.l.b16 %v68
    %v224 = vunpack.c.l.b16 %v69
    %v225 = vunpack.c.l.b16 %v70
    %v226 = vunpack.c.l.b16 %v71
    %v227 = vunpack.c.l.b16 %v72
    %v228 = vunpack.c.l.b16 %v73
    %v229 = vunpack.c.l.b16 %v74
    %v230 = vunpack.c.l.b16 %v75
    %v231 = vunpack.c.l.b16 %v76
    %v232 = vunpack.c.l.b16 %v77
    %v233 = vpack.c.b16 %v218, %v217
    %v234 = vpack.c.b16 %v220, %v219
    %v235 = vpack.c.b16 %v222, %v221
    %v236 = vpack.c.b16 %v224, %v223
    %v237 = vpack.c.b16 %v226, %v225
    %v238 = vpack.c.b16 %v228, %v227
    %v239 = vpack.c.b16 %v230, %v229
    %v240 = vpack.c.b16 %v232, %v231
    %249 = vmatprep.subr.bf16.mxu0 0
    %250 = vmatpush1.bf16.msra.mxu0 %v233
    %251 = vmatprep.subr.bf16.mxu0 0
    %252 = vmatpush1.bf16.msra.mxu0 %v234
    %253 = vmatprep.subr.bf16.mxu0 0
    %254 = vmatpush1.bf16.msra.mxu0 %v235
    %255 = vmatprep.subr.bf16.mxu0 0
    %256 = vmatpush1.bf16.msra.mxu0 %v236
    %257 = vmatprep.subr.bf16.mxu0 0
    %258 = vmatpush1.bf16.msra.mxu0 %v237
    %259 = vmatprep.subr.bf16.mxu0 0
    %260 = vmatpush1.bf16.msra.mxu0 %v238
    %261 = vmatprep.subr.bf16.mxu0 0
    %262 = vmatpush1.bf16.msra.mxu0 %v239
    %263 = vmatprep.subr.bf16.mxu0 0
    %264 = vmatpush1.bf16.msra.mxu0 %v240
    %265 = vmatprep.subr.bf16.mxu0 0
    %266 = vmatpush1.bf16.msra.mxu0 0
    %267 = vmatprep.subr.bf16.mxu0 0
    %268 = vmatpush1.bf16.msra.mxu0 0
    %269 = vmatprep.subr.bf16.mxu0 0
    %270 = vmatpush1.bf16.msra.mxu0 0
    %271 = vmatprep.subr.bf16.mxu0 0
    %272 = vmatpush1.bf16.msra.mxu0 0
    %273 = vmatprep.subr.bf16.mxu0 0
    %274 = vmatpush1.bf16.msra.mxu0 0
    %275 = vmatprep.subr.bf16.mxu0 0
    %276 = vmatpush1.bf16.msra.mxu0 0
    %277 = vmatprep.subr.bf16.mxu0 0
    %278 = vmatpush1.bf16.msra.mxu0 0
    %279 = vmatprep.subr.bf16.mxu0 0
    %280 = vmatpush1.bf16.msra.mxu0 0
    %281 = vmatprep.mubr.bf16.mxu0 0
    %282 = vmatmul.mubr.bf16.gmra.mrb[0].mxu0 %v196
    %v283 = vpop.f32.mrb[0].mxu0
    %v284 = vadd.f32 %v200, %v283
    %v285 = vpop.f32.mrb[0].mxu0
    %v286 = vpop.f32.mrb[0].mxu0
    %v287 = vadd.f32 %v200, %v286
    %v288 = vpop.f32.mrb[0].mxu0
    %289 = vdwg.mxu0
    %v290 = vmax.f32 %v284, 0.0
    %v291 = vmax.f32 %v287, 0.0
    %v292 = vpack.c.bf16 %v291, %v290
    %v293 = vlaneseq
    %v294 = vshrl.u32 %v293, 7
    %v295 = vsub.s32 2, %v294
    %v296 = vrot.slane %v94, %v295
    %v313 = vunpack.c.l.b16 %v78
    %v314 = vunpack.c.l.b16 %v79
    %v315 = vunpack.c.l.b16 %v80
    %v316 = vunpack.c.l.b16 %v81
    %v317 = vunpack.c.l.b16 %v82
    %v318 = vunpack.c.l.b16 %v83
    %v319 = vunpack.c.l.b16 %v84
    %v320 = vunpack.c.l.b16 %v85
    %v321 = vunpack.c.l.b16 %v86
    %v322 = vunpack.c.l.b16 %v87
    %v323 = vunpack.c.l.b16 %v88
    %v324 = vunpack.c.l.b16 %v89
    %v325 = vunpack.c.l.b16 %v90
    %v326 = vunpack.c.l.b16 %v91
    %v327 = vunpack.c.l.b16 %v92
    %v328 = vunpack.c.l.b16 %v93
    %v329 = vpack.c.b16 %v314, %v313
    %v330 = vpack.c.b16 %v316, %v315
    %v331 = vpack.c.b16 %v318, %v317
    %v332 = vpack.c.b16 %v320, %v319
    %v333 = vpack.c.b16 %v322, %v321
    %v334 = vpack.c.b16 %v324, %v323
    %v335 = vpack.c.b16 %v326, %v325
    %v336 = vpack.c.b16 %v328, %v327
    %345 = vmatprep.subr.bf16.mxu0 0
    %346 = vmatpush1.bf16.msra.mxu0 %v329
    %347 = vmatprep.subr.bf16.mxu0 0
    %348 = vmatpush1.bf16.msra.mxu0 %v330
    %349 = vmatprep.subr.bf16.mxu0 0
    %350 = vmatpush1.bf16.msra.mxu0 %v331
    %351 = vmatprep.subr.bf16.mxu0 0
    %352 = vmatpush1.bf16.msra.mxu0 %v332
    %353 = vmatprep.subr.bf16.mxu0 0
    %354 = vmatpush1.bf16.msra.mxu0 %v333
    %355 = vmatprep.subr.bf16.mxu0 0
    %356 = vmatpush1.bf16.msra.mxu0 %v334
    %357 = vmatprep.subr.bf16.mxu0 0
    %358 = vmatpush1.bf16.msra.mxu0 %v335
    %359 = vmatprep.subr.bf16.mxu0 0
    %360 = vmatpush1.bf16.msra.mxu0 %v336
    %361 = vmatprep.subr.bf16.mxu0 0
    %362 = vmatpush1.bf16.msra.mxu0 0
    %363 = vmatprep.subr.bf16.mxu0 0
    %364 = vmatpush1.bf16.msra.mxu0 0
    %365 = vmatprep.subr.bf16.mxu0 0
    %366 = vmatpush1.bf16.msra.mxu0 0
    %367 = vmatprep.subr.bf16.mxu0 0
    %368 = vmatpush1.bf16.msra.mxu0 0
    %369 = vmatprep.subr.bf16.mxu0 0
    %370 = vmatpush1.bf16.msra.mxu0 0
    %371 = vmatprep.subr.bf16.mxu0 0
    %372 = vmatpush1.bf16.msra.mxu0 0
    %373 = vmatprep.subr.bf16.mxu0 0
    %374 = vmatpush1.bf16.msra.mxu0 0
    %375 = vmatprep.subr.bf16.mxu0 0
    %376 = vmatpush1.bf16.msra.mxu0 0
    %377 = vmatprep.mubr.bf16.mxu0 0
    %378 = vmatmul.mubr.bf16.gmra.mrb[0].mxu0 %v292
    %v379 = vpop.f32.mrb[0].mxu0
    %v380 = vadd.f32 %v296, %v379
    %v381 = vpop.f32.mrb[0].mxu0
    %v382 = vpop.f32.mrb[0].mxu0
    %v383 = vadd.f32 %v296, %v382
    %v384 = vpop.f32.mrb[0].mxu0
    %385 = vdwg.mxu0
    %386 = vst [vmem:[#allocation7] sm:$0xff] %v380
    %387 = vst [vmem:[#allocation7 + $0x8] sm:$0xff] %v383
    // Predicated region
    $region22: #{tpu_custom_call.1} parent=1 // pred_check
      _
    $region23: #{tpu_custom_call.1} parent=1 // pred_check_branch
      %389 = sbr.rel (0) target = $region25
    $region24: #{tpu_custom_call.1} parent=1 // pred_region
      %s391 = ssub.s32 256, 256
      %392 = vsyncadd [#allocation4], %s391
      %s393 = sshll.u32 [#allocation7], 4
      %s394 = int_to_ptr.vmem [resolvable:$true] %s393
      %399 = dma.vmem_to_hbm [thread:$0]  %s394, 256, %s3, [#allocation4], 128, 128, 8
    $region25: #{tpu_custom_call.1} parent=1 // pred_fallthru
      _
    // Predicated region
    $region26: #{tpu_custom_call.1} parent=1 // pred_check
      _
    $region27: #{tpu_custom_call.1} parent=1 // pred_check_branch
      %401 = sbr.rel (0) target = $region29
    $region28: #{tpu_custom_call.1} parent=1 // pred_region
      %402 = dma.done [#allocation4], 256
    $region29: #{tpu_custom_call.1} parent=1 // pred_fallthru
      _
    %403 = vsyncpa [#allocation3], 1
    %404 = vsyncpa [#allocation6], 1
    %405 = vsyncpa [#allocation4], 1

</llo_original>
